<compile_context>
chip_gen: v6e
topology: v6e:2x2x1
jax: 0.10.0
libtpu: 0.0.40
codegen_flags: <defaults>
</compile_context>

<pallas_src>
import functools

import jax
import jax.numpy as jnp
from jax import lax
from jax.experimental import pallas as pl
from jax.experimental.pallas import tpu as pltpu

EPS = 1e-5


def _round_up(x, m):
    return ((x + m - 1) // m) * m


def _footprint(tm, npad, hpad, resident):
    """VMEM bytes for one propagation call, lane-padding-aware, 2 buffers each."""
    a_bytes = (2 * npad * npad * 2) if resident else (2 * tm * npad * 2)   # bf16
    hfull = 2 * npad * hpad * 2                                            # bf16, resident RHS
    addend = 2 * tm * hpad * 4                                             # f32 row tile
    out_t = 2 * tm * hpad * 4                                              # f32 output tile
    w = 2 * hpad * hpad * 4                                                # f32 weight
    small = 2 * (3 * hpad * 4 + 64)                                        # biases, slopes
    return a_bytes + hfull + addend + out_t + w + small


def _plan(n, h):
    """Pick row tile, padding and A-residency from the actual VMEM capacity."""
    hpad = _round_up(max(h, 128), 128)
    try:
        capacity = int(pltpu.get_tpu_info().vmem_capacity_bytes)
    except Exception:                       # conservative default (v7x-sized)
        capacity = 64 * 1024 * 1024
    budget = (capacity * 3) // 4            # ~96 MiB on v5e/v6e, ~48 MiB on v7x

    tm = min(1024, _round_up(n, 8))
    while tm > 8 and _footprint(tm, _round_up(n, tm), hpad, resident=False) > budget:
        tm = max(8, _round_up(tm // 2, 8))
    npad = _round_up(n, tm)

    resident = _footprint(tm, npad, hpad, resident=True) <= budget
    fp = _footprint(tm, npad, hpad, resident)
    vmem_limit = int(min(capacity - (2 << 20), max(32 << 20, fp + (4 << 20))))
    # TODO(synk): for graphs where even the streamed (tm, npad) A tile overflows
    # VMEM, add a K (column) grid axis with an f32 accumulator instead of
    # shrinking tm further.
    return tm, npad, hpad, resident, vmem_limit


def _prop_kernel(a_ref, hfull_ref, addend_ref, b_ref, slope_ref, w_ref, out_ref,
                 *, tm, a_resident):
    """One GCN propagation + fused follow-up GEMM for one row tile:

        act = prelu( A[rows] @ H_full + b )
        out[rows] = act @ W + addend
    """
    if a_resident:
        row0 = pl.multiple_of(pl.program_id(0) * tm, tm)
        a_tile = a_ref[pl.ds(row0, tm), :]          # slice the VMEM-resident A
    else:
        a_tile = a_ref[...]                         # streamed (tm, npad) row band

    acc = jnp.dot(a_tile, hfull_ref[...], preferred_element_type=jnp.float32)
    acc = acc + b_ref[...]
    s = slope_ref[0, 0]
    act = jnp.where(acc >= 0, acc, s * acc)

    out = jnp.dot(act, w_ref[...], preferred_element_type=jnp.float32) + addend_ref[...]
    out_ref[...] = out.astype(out_ref.dtype)


def _propagate(a_pad, hfull, addend, bias, slope, w, out_dtype,
               *, tm, npad, hpad, resident, vmem_limit, addend_tiled):
    n_tiles = npad // tm
    kernel = functools.partial(_prop_kernel, tm=tm, a_resident=resident)

    if resident:   # full A DMA'd once (constant block index), sliced in-kernel
        a_spec = pl.BlockSpec((npad, npad), lambda i: (0, 0))
    else:          # A streamed as lane-dense row bands
        a_spec = pl.BlockSpec((tm, npad), lambda i: (i, 0))

    if addend_tiled:
        add_spec = pl.BlockSpec((tm, hpad), lambda i: (i, 0))
    else:
        add_spec = pl.BlockSpec((1, hpad), lambda i: (0, 0))

    const = lambda i: (0, 0)

    return pl.pallas_call(
        kernel,
        grid_spec=pltpu.PrefetchScalarGridSpec(
            num_scalar_prefetch=0,
            grid=(n_tiles,),
            in_specs=[
                a_spec,                                     # A_hat (bf16)
                pl.BlockSpec((npad, hpad), const),          # full propagated features (bf16)
                add_spec,                                   # additive term
                pl.BlockSpec((1, hpad), const),             # GCN bias
                pl.BlockSpec((1, 1), const),                # PReLU slope
                pl.BlockSpec((hpad, hpad), const),          # follow-up weight
            ],
            out_specs=pl.BlockSpec((tm, hpad), lambda i: (i, 0)),
        ),
        out_shape=jax.ShapeDtypeStruct((npad, hpad), out_dtype),
        compiler_params=pltpu.CompilerParams(
            # Row tiles are independent -> megacore / both v7x TCs.
            dimension_semantics=("parallel",),
            vmem_limit_bytes=vmem_limit,
        ),
    )(a_pad, hfull, addend, bias, slope, w)


def build_norm_adj(edge_index, num_nodes):
    """Dense D^{-1/2} (A + I) D^{-1/2} following PyG gcn_norm (edges flow src->dst)."""
    src, dst = edge_index[0], edge_index[1]
    a = jnp.zeros((num_nodes, num_nodes), jnp.float32)
    a = a.at[dst, src].add(1.0)                        # A_hat[i, j] != 0 iff edge j -> i
    a = a + jnp.eye(num_nodes, dtype=jnp.float32)      # add self loops
    deg = jnp.sum(a, axis=1)
    dinv = jnp.where(deg > 0, 1.0 / jnp.sqrt(deg), 0.0)
    return dinv[:, None] * a * dinv[None, :]


def gnn_forward(x, edge_index, params):
    n, fin = x.shape
    h = params["w1"].shape[1]
    tm, npad, hpad, resident, vmem_limit = _plan(n, h)

    a_hat = build_norm_adj(edge_index, n).astype(jnp.bfloat16)
    a_pad = jnp.zeros((npad, npad), jnp.bfloat16).at[:n, :n].set(a_hat)
    x_pad = jnp.zeros((npad, fin), jnp.float32).at[:n, :].set(x)

    # Zero-pad the hidden dim to hpad (=128-lane multiple) so every kernel
    # buffer / store is lane-dense; padded columns stay exactly zero.
    def pad_cols(w):
        return jnp.zeros((w.shape[0], hpad), w.dtype).at[:, :w.shape[1]].set(w)

    def pad_both(w):
        return jnp.zeros((hpad, hpad), w.dtype).at[:w.shape[0], :w.shape[1]].set(w)

    w1p = pad_cols(params["w1"])          # (fin, hpad)
    w2bp = pad_cols(params["w2b"])        # (fin, hpad)
    w2ap = pad_both(params["w2a"])        # (hpad, hpad)
    lw1p = pad_both(params["lw1"])        # (hpad, hpad)
    b1p = pad_cols(params["b1"])
    b2p = pad_cols(params["b2"])
    lb1p = pad_cols(params["lb1"])

    # Hoisted "pass 0": tiny K=fin GEMMs underfill the MXU -> do them in XLA.
    h1 = (x_pad @ w1p).astype(jnp.bfloat16)   # x @ W1
    hxb = x_pad @ w2bp                        # x @ W2b (f32)

    kw = dict(tm=tm, npad=npad, hpad=hpad, resident=resident, vmem_limit=vmem_limit)

    # Stage 1: h2 = prelu(A_hat @ h1 + b1) @ W2a + x @ W2b
    h2 = _propagate(a_pad, h1, hxb, b1p, params["pre1"], w2ap,
                    jnp.bfloat16, addend_tiled=True, **kw)

    # Stage 2: z = prelu(A_hat @ h2 + b2) @ LW1 + lb1   (pre-BN head activation)
    z_pad = _propagate(a_pad, h2, lb1p, b2p, params["pre1"], lw1p,
                       jnp.float32, addend_tiled=False, **kw)

    # Hoisted head tail: BatchNorm1d (training-mode batch stats, biased var),
    # PReLU and the H->1 projection on the un-padded rows/cols.
    z = z_pad[:n, :h]
    mu = jnp.mean(z, axis=0, keepdims=True)
    var = jnp.var(z, axis=0, keepdims=True)
    zn = params["gamma"] * (z - mu) * lax.rsqrt(var + EPS) + params["beta"]
    a2 = params["pre2"][0, 0]
    act = jnp.where(zn >= 0, zn, a2 * zn)
    return act @ params["lw2"] + params["lb2"]


def init_params(key, input_size, hidden, output_size=1):
    ks = jax.random.split(key, 8)

    def glorot(k, shape):
        lim = jnp.sqrt(6.0 / (shape[0] + shape[1]))
        return jax.random.uniform(k, shape, jnp.float32, -lim, lim)

    def lin_init(kw, kb, fan_in, fan_out):
        lim = 1.0 / jnp.sqrt(fan_in)
        w = jax.random.uniform(kw, (fan_in, fan_out), jnp.float32, -lim, lim)
        b = jax.random.uniform(kb, (1, fan_out), jnp.float32, -lim, lim)
        return w, b

    w2 = glorot(ks[1], (hidden + input_size, hidden))    # acts on cat([x1, x])
    lw1, lb1 = lin_init(ks[2], ks[3], hidden, hidden)
    lw2, lb2 = lin_init(ks[4], ks[5], hidden, output_size)
    return {
        "w1": glorot(ks[0], (input_size, hidden)),
        "b1": jnp.zeros((1, hidden), jnp.float32),
        "w2a": w2[:hidden, :],                           # slice multiplying x1
        "w2b": w2[hidden:, :],                           # slice multiplying x
        "b2": jnp.zeros((1, hidden), jnp.float32),
        "pre1": jnp.full((1, 1), 0.25, jnp.float32),     # shared self.prelu
        "lw1": lw1, "lb1": lb1,
        "gamma": jnp.ones((1, hidden), jnp.float32),     # BatchNorm1d affine init
        "beta": jnp.zeros((1, hidden), jnp.float32),
        "pre2": jnp.full((1, 1), 0.25, jnp.float32),     # PReLU inside Sequential
        "lw2": lw2, "lb2": lb2,
    }


if __name__ == "__main__":
    N_NODES, INPUT_SIZE, HIDDEN = 16, 8, 32

    key = jax.random.PRNGKey(0)
    kx, kp = jax.random.split(key)
    x = jax.random.normal(kx, (N_NODES, INPUT_SIZE), jnp.float32)

    # Deterministic undirected ring graph (no self loops / duplicates).
    src = jnp.arange(N_NODES, dtype=jnp.int32)
    dst = (src + 1) % N_NODES
    edge_index = jnp.stack([jnp.concatenate([src, dst]),
                            jnp.concatenate([dst, src])], axis=0)   # [2, 2N]

    params = init_params(kp, INPUT_SIZE, HIDDEN, output_size=1)

    out = gnn_forward(x, edge_index, params)
    jax.block_until_ready(out)
    assert out.shape == (N_NODES, 1)
    print("KERNEL_OK")
</pallas_src>

<mosaic_0001>
module attributes {stable_mosaic.version = 11 : i64} {
  func.func @_prop_kernel(%arg0: i32, %arg1: memref<16x16xbf16, #tpu.memory_space<vmem>>, %arg2: memref<16x128xbf16, #tpu.memory_space<vmem>>, %arg3: memref<16x128xf32, #tpu.memory_space<vmem>>, %arg4: memref<1x128xf32, #tpu.memory_space<vmem>>, %arg5: memref<1x1xf32, #tpu.memory_space<vmem>>, %arg6: memref<128x128xf32, #tpu.memory_space<vmem>>, %arg7: memref<16x128xbf16, #tpu.memory_space<vmem>>) attributes {dimension_semantics = [#tpu.dimension_semantics<parallel>], iteration_bounds = array<i64: 1>, scalar_prefetch = 0 : i64, scratch_operands = 0 : i64, tpu.core_type = #tpu.core_type<tc>, window_params = [{pipeline_mode = #tpu.pipeline_mode<synchronous>, transform_indices = @transform_0, window_bounds = array<i64: 16, 16>}, {pipeline_mode = #tpu.pipeline_mode<synchronous>, transform_indices = @transform_1, window_bounds = array<i64: 16, 128>}, {transform_indices = @transform_2, window_bounds = array<i64: 16, 128>}, {pipeline_mode = #tpu.pipeline_mode<synchronous>, transform_indices = @transform_3, window_bounds = array<i64: 1, 128>}, {pipeline_mode = #tpu.pipeline_mode<synchronous>, transform_indices = @transform_4, window_bounds = array<i64: 1, 1>}, {pipeline_mode = #tpu.pipeline_mode<synchronous>, transform_indices = @transform_5, window_bounds = array<i64: 128, 128>}, {transform_indices = @transform_6, window_bounds = array<i64: 16, 128>}]} {
    %c16_i32 = arith.constant 16 : i32
    %0 = arith.muli %arg0, %c16_i32 : i32
    %1 = tpu.assume_multiple %0, 16 : i32
    %2 = arith.index_cast %1 : i32 to index
    %c0 = arith.constant 0 : index
    %3 = vector.load %arg1[%2, %c0] : memref<16x16xbf16, #tpu.memory_space<vmem>>, vector<16x16xbf16>
    %c0_0 = arith.constant 0 : index
    %c0_1 = arith.constant 0 : index
    %4 = vector.load %arg2[%c0_0, %c0_1] : memref<16x128xbf16, #tpu.memory_space<vmem>>, vector<16x128xbf16>
    %cst = arith.constant dense<0.000000e+00> : vector<16x128xf32>
    %5 = tpu.matmul %3, %4, %cst {dimension_numbers = #tpu.dot_dimension_numbers<[1], [0], [0], [1], [0, 0, 1, 1], [], []>} : vector<16x16xbf16>, vector<16x128xbf16>, vector<16x128xf32> -> vector<16x128xf32>
    %c0_2 = arith.constant 0 : index
    %c0_3 = arith.constant 0 : index
    %6 = vector.load %arg4[%c0_2, %c0_3] : memref<1x128xf32, #tpu.memory_space<vmem>>, vector<1x128xf32>
    %7 = vector.broadcast %6 : vector<1x128xf32> to vector<16x128xf32>
    %8 = arith.addf %5, %7 : vector<16x128xf32>
    %c0_4 = arith.constant 0 : index
    %c0_5 = arith.constant 0 : index
    %9 = vector.load %arg5[%c0_4, %c0_5] : memref<1x1xf32, #tpu.memory_space<vmem>>, vector<1x1xf32>
    %10 = vector.extract %9[0, 0] : f32 from vector<1x1xf32>
    %cst_6 = arith.constant 0.000000e+00 : f32
    %11 = vector.broadcast %cst_6 : f32 to vector<16x128xf32>
    %12 = arith.cmpf oge, %8, %11 : vector<16x128xf32>
    %13 = vector.broadcast %10 : f32 to vector<16x128xf32>
    %14 = arith.mulf %13, %8 : vector<16x128xf32>
    %15 = arith.select %12, %8, %14 : vector<16x128xi1>, vector<16x128xf32>
    %c0_7 = arith.constant 0 : index
    %c0_8 = arith.constant 0 : index
    %16 = vector.load %arg6[%c0_7, %c0_8] : memref<128x128xf32, #tpu.memory_space<vmem>>, vector<128x128xf32>
    %cst_9 = arith.constant dense<0.000000e+00> : vector<16x128xf32>
    %17 = tpu.matmul %15, %16, %cst_9 {dimension_numbers = #tpu.dot_dimension_numbers<[1], [0], [0], [1], [0, 0, 1, 1], [], []>} : vector<16x128xf32>, vector<128x128xf32>, vector<16x128xf32> -> vector<16x128xf32>
    %c0_10 = arith.constant 0 : index
    %c0_11 = arith.constant 0 : index
    %18 = vector.load %arg3[%c0_10, %c0_11] : memref<16x128xf32, #tpu.memory_space<vmem>>, vector<16x128xf32>
    %19 = arith.addf %17, %18 : vector<16x128xf32>
    %20 = arith.truncf %19 : vector<16x128xf32> to vector<16x128xbf16>
    %c0_12 = arith.constant 0 : index
    %c0_13 = arith.constant 0 : index
    %21 = vector.load %arg7[%c0_12, %c0_13] : memref<16x128xbf16, #tpu.memory_space<vmem>>, vector<16x128xbf16>
    tpu.vector_store %arg7[%c0_12, %c0_13], %20 {strides = array<i32>} : memref<16x128xbf16, #tpu.memory_space<vmem>>, vector<16x128xbf16>,
    return
  }
  func.func @transform_0(%arg0: i32) -> (i32, i32) {
    %c0_i32 = arith.constant 0 : i32
    %c0_i32_0 = arith.constant 0 : i32
    %c0_i32_1 = arith.constant 0 : i32
    return %c0_i32, %c0_i32_0 : i32, i32
  }
  func.func @transform_1(%arg0: i32) -> (i32, i32) {
    %c0_i32 = arith.constant 0 : i32
    %c0_i32_0 = arith.constant 0 : i32
    %c0_i32_1 = arith.constant 0 : i32
    return %c0_i32, %c0_i32_0 : i32, i32
  }
  func.func @transform_2(%arg0: i32) -> (i32, i32) {
    %c0_i32 = arith.constant 0 : i32
    %c0_i32_0 = arith.constant 0 : i32
    return %arg0, %c0_i32 : i32, i32
  }
  func.func @transform_3(%arg0: i32) -> (i32, i32) {
    %c0_i32 = arith.constant 0 : i32
    %c0_i32_0 = arith.constant 0 : i32
    %c0_i32_1 = arith.constant 0 : i32
    return %c0_i32, %c0_i32_0 : i32, i32
  }
  func.func @transform_4(%arg0: i32) -> (i32, i32) {
    %c0_i32 = arith.constant 0 : i32
    %c0_i32_0 = arith.constant 0 : i32
    %c0_i32_1 = arith.constant 0 : i32
    return %c0_i32, %c0_i32_0 : i32, i32
  }
  func.func @transform_5(%arg0: i32) -> (i32, i32) {
    %c0_i32 = arith.constant 0 : i32
    %c0_i32_0 = arith.constant 0 : i32
    %c0_i32_1 = arith.constant 0 : i32
    return %c0_i32, %c0_i32_0 : i32, i32
  }
  func.func @transform_6(%arg0: i32) -> (i32, i32) {
    %c0_i32 = arith.constant 0 : i32
    %c0_i32_0 = arith.constant 0 : i32
    return %arg0, %c0_i32 : i32, i32
  }
}

</mosaic_0001>

<llo_original>
// kernel: tpu_custom_call.1
$region0: #{tpu_custom_call.1}
  #allocation0 [shape = 'u32[]', space=smem, size = 0x4, offset = 0x4, fixed_abs, tag = 'smem constant byte address 0x4 - core index']
  #allocation1 [shape = 'u32[144,128]{1,0:T(1,128)}', space=vmem, size = 0x12000, scoped, tag = 'internal scratch']
  #allocation2 [shape = 'f32[1,1]{1,0:T(1,128)S(1)}', space=vmem, size = 0x200, scoped, tag = 'scoped memory for tpu_custom_call.1']
  %s0 = inlined_call_operand.hbm [shape: bf16[16,16], index: 0, kind: input, shape index: {}]
  %s1 = inlined_call_operand.hbm [shape: bf16[16,128], index: 1, kind: input, shape index: {}]
  %s2 = inlined_call_operand.hbm [shape: f32[16,128], index: 2, kind: input, shape index: {}]
  %s3 = inlined_call_operand.vmem [shape: f32[1,128], index: 3, kind: input, shape index: {}]
  %s4 = inlined_call_operand.<no memory space> [shape: f32[1,1], index: 4, kind: input, shape index: {}]
  %s5 = inlined_call_operand.hbm [shape: f32[128,128], index: 5, kind: input, shape index: {}]
  %s6 = inlined_call_operand.hbm [shape: bf16[16,128], index: 6, kind: output, shape index: {}]
  %s7 = sld [smem:[#allocation0]]
  $region50: #{tpu_custom_call.1} parent=0
    _
  %s9 = ssub.s32 1, %s7
  %s10 = scalar_select 0, %s9, %s7
  %v11 = vstv %s4
  %12 = vst [vmem:[#allocation2] sm:$0x1] %v11
  $region1: #{tpu_custom_call.1} parent=0
    #allocation3 [shape = 'u8[4096]{0}', space=vmem, size = 0x1000, scoped, tag = 'input window, operand 0, single buffered']
    #allocation4 [shape = 's32[1]{0}', space=sflag, size = 0x4, scoped, tag = 'scoped memory for tpu_custom_call.1']
    #allocation5 [shape = 's32[1]{0}', space=sflag, size = 0x4, scoped, tag = 'scoped memory for tpu_custom_call.1']
    #allocation6 [shape = 'u8[4096]{0}', space=vmem, size = 0x1000, scoped, tag = 'input window, operand 1, single buffered']
    #allocation7 [shape = 's32[1]{0}', space=sflag, size = 0x4, scoped, tag = 'scoped memory for tpu_custom_call.1']
    #allocation8 [shape = 'u8[8192]{0}', space=vmem, size = 0x2000, scoped, tag = 'input window, operand 2, single buffered']
    #allocation9 [shape = 'u8[65536]{0}', space=vmem, size = 0x10000, scoped, tag = 'input window, operand 5, single buffered']
    #allocation10 [shape = 's32[1]{0}', space=sflag, size = 0x4, scoped, tag = 'scoped memory for tpu_custom_call.1']
    #allocation11 [shape = 'u8[4096]{0}', space=vmem, size = 0x1000, scoped, tag = 'output window, operand 0, single buffered']
    %13 = vsyncpa [#allocation4], 0
    %14 = vsyncpa [#allocation7], 0
    %15 = vsyncpa [#allocation10], 0
    %16 = vsyncpa [#allocation5], 0
    // Predicated region
    $region2: #{tpu_custom_call.1} parent=1 // pred_check
      _
    $region3: #{tpu_custom_call.1} parent=1 // pred_check_branch
      %18 = sbr.rel (0) target = $region5
    $region4: #{tpu_custom_call.1} parent=1 // pred_region
      %s20 = ssub.s32 128, 128
      %21 = vsyncadd [#allocation4], %s20
      %s22 = sshll.u32 [#allocation3], 4
      %s23 = int_to_ptr.vmem [resolvable:$true] %s22
      %28 = dma.hbm_to_vmem [thread:$0]  %s0, 128, %s23, [#allocation4], 64, 64, 4
    $region5: #{tpu_custom_call.1} parent=1 // pred_fallthru
      _
    // Predicated region
    $region6: #{tpu_custom_call.1} parent=1 // pred_check
      _
    $region7: #{tpu_custom_call.1} parent=1 // pred_check_branch
      %30 = sbr.rel (0) target = $region9
    $region8: #{tpu_custom_call.1} parent=1 // pred_region
      %s32 = ssub.s32 128, 128
      %33 = vsyncadd [#allocation7], %s32
      %s34 = sshll.u32 [#allocation6], 4
      %s35 = int_to_ptr.vmem [resolvable:$true] %s34
      %40 = dma.hbm_to_vmem [thread:$0]  %s1, 128, %s35, [#allocation7], 64, 64, 4
    $region9: #{tpu_custom_call.1} parent=1 // pred_fallthru
      _
    // Predicated region
    $region10: #{tpu_custom_call.1} parent=1 // pred_check
      _
    $region11: #{tpu_custom_call.1} parent=1 // pred_check_branch
      %42 = sbr.rel (0) target = $region13
    $region12: #{tpu_custom_call.1} parent=1 // pred_region
      %s44 = ssub.s32 256, 256
      %45 = vsyncadd [#allocation7], %s44
      %s46 = sshll.u32 [#allocation8], 4
      %s47 = int_to_ptr.vmem [resolvable:$true] %s46
      %52 = dma.hbm_to_vmem [thread:$0]  %s2, 256, %s47, [#allocation7], 128, 128, 8
    $region13: #{tpu_custom_call.1} parent=1 // pred_fallthru
      _
    // Predicated region
    $region14: #{tpu_custom_call.1} parent=1 // pred_check
      _
    $region15: #{tpu_custom_call.1} parent=1 // pred_check_branch
      %54 = sbr.rel (0) target = $region17
    $region16: #{tpu_custom_call.1} parent=1 // pred_region
      _
    $region17: #{tpu_custom_call.1} parent=1 // pred_fallthru
      _
    // Predicated region
    $region18: #{tpu_custom_call.1} parent=1 // pred_check
      _
    $region19: #{tpu_custom_call.1} parent=1 // pred_check_branch
      %56 = sbr.rel (0) target = $region21
    $region20: #{tpu_custom_call.1} parent=1 // pred_region
      _
    $region21: #{tpu_custom_call.1} parent=1 // pred_fallthru
      _
    // Predicated region
    $region22: #{tpu_custom_call.1} parent=1 // pred_check
      _
    $region23: #{tpu_custom_call.1} parent=1 // pred_check_branch
      %58 = sbr.rel (0) target = $region25
    $region24: #{tpu_custom_call.1} parent=1 // pred_region
      %s60 = ssub.s32 2048, 2048
      %61 = vsyncadd [#allocation10], %s60
      %s62 = sshll.u32 [#allocation9], 4
      %s63 = int_to_ptr.vmem [resolvable:$true] %s62
      %68 = dma.hbm_to_vmem [thread:$0]  %s5, 2048, %s63, [#allocation10], 128, 128, 8
    $region25: #{tpu_custom_call.1} parent=1 // pred_fallthru
      _
    // Predicated region
    $region26: #{tpu_custom_call.1} parent=1 // pred_check
      _
    $region27: #{tpu_custom_call.1} parent=1 // pred_check_branch
      %70 = sbr.rel (0) target = $region29
    $region28: #{tpu_custom_call.1} parent=1 // pred_region
      %71 = dma.done [#allocation4], 128
    $region29: #{tpu_custom_call.1} parent=1 // pred_fallthru
      _
    // Predicated region
    $region30: #{tpu_custom_call.1} parent=1 // pred_check
      _
    $region31: #{tpu_custom_call.1} parent=1 // pred_check_branch
      %73 = sbr.rel (0) target = $region33
    $region32: #{tpu_custom_call.1} parent=1 // pred_region
      %74 = dma.done [#allocation7], 128
    $region33: #{tpu_custom_call.1} parent=1 // pred_fallthru
      _
    // Predicated region
    $region34: #{tpu_custom_call.1} parent=1 // pred_check
      _
    $region35: #{tpu_custom_call.1} parent=1 // pred_check_branch
      %76 = sbr.rel (0) target = $region37
    $region36: #{tpu_custom_call.1} parent=1 // pred_region
      %77 = dma.done [#allocation7], 256
    $region37: #{tpu_custom_call.1} parent=1 // pred_fallthru
      _
    // Predicated region
    $region38: #{tpu_custom_call.1} parent=1 // pred_check
      _
    $region39: #{tpu_custom_call.1} parent=1 // pred_check_branch
      %79 = sbr.rel (0) target = $region41
    $region40: #{tpu_custom_call.1} parent=1 // pred_region
      %80 = dma.done [#allocation10], 2048
    $region41: #{tpu_custom_call.1} parent=1 // pred_fallthru
      _
    %s82 = smul.u32 0, 16
    %s83 = sshra.s32 %s82, 3
    %s84 = sand.u32 %s82, 7
    %s85 = smul.addr %s83, 4
    %s86 = scalar_lea.vmem [#allocation3], %s85
    %v87 = vld [vmem:[%s86] sm:$0xf]
    %v88 = vld [vmem:[%s86 + $0x4] sm:$0xf]
    %v89 = vld [vmem:[#allocation6] sm:$0xf]
    %v90 = vld [vmem:[#allocation6 + $0x4] sm:$0xf]
    %v91 = vld [vmem:[%s3] sm:$0x1]
    %v93 = vlaneseq
    %v94 = vshrl.u32 %v93, 7
    %v95 = vsub.s32 0, %v94
    %v96 = vrot.slane %v91, %v95
    %v100 = vunpack.c.l.b16 %v87
    %v101 = vunpack.c.l.b16 %v88
    %v102 = vpack.c.b16 %v101, %v100
    %v105 = vunpack.c.l.b16 %v89
    %v106 = vunpack.c.l.b16 %v90
    %v107 = vpack.c.b16 %v106, %v105
    %vm109 = vcmask 130048
    %v111 = vsel %vm109, %v102, 0
    %113 = vmatprep.subr.bf16.mxu0 0
    %114 = vmatpush1.bf16.msra.mxu0 0
    %115 = vmatprep.subr.bf16.mxu0 0
    %116 = vmatpush1.bf16.msra.mxu0 0
    %117 = vmatprep.subr.bf16.mxu0 0
    %118 = vmatpush1.bf16.msra.mxu0 0
    %119 = vmatprep.subr.bf16.mxu0 0
    %120 = vmatpush1.bf16.msra.mxu0 0
    %121 = vmatprep.subr.bf16.mxu0 0
    %122 = vmatpush1.bf16.msra.mxu0 0
    %123 = vmatprep.subr.bf16.mxu0 0
    %124 = vmatpush1.bf16.msra.mxu0 0
    %125 = vmatprep.subr.bf16.mxu0 0
    %126 = vmatpush1.bf16.msra.mxu0 0
    %127 = vmatprep.subr.bf16.mxu0 0
    %128 = vmatpush1.bf16.msra.mxu0 %v107
    %129 = vmatprep.subr.bf16.mxu0 0
    %130 = vmatpush2.bf16.msra.mxu0 0
    %131 = vmatprep.subr.bf16.mxu0 0
    %132 = vmatpush2.bf16.msra.mxu0 0
    %133 = vmatprep.subr.bf16.mxu0 0
    %134 = vmatpush2.bf16.msra.mxu0 0
    %135 = vmatprep.subr.bf16.mxu0 0
    %136 = vmatpush2.bf16.msra.mxu0 0
    %137 = vmatprep.subr.bf16.mxu0 0
    %138 = vmatpush2.bf16.msra.mxu0 0
    %139 = vmatprep.subr.bf16.mxu0 0
    %140 = vmatpush2.bf16.msra.mxu0 0
    %141 = vmatprep.subr.bf16.mxu0 0
    %142 = vmatpush2.bf16.msra.mxu0 0
    %143 = vmatprep.subr.bf16.mxu0 0
    %144 = vmatpush2.bf16.msra.mxu0 0
    %145 = vmatprep.mubr.bf16.mxu0 0
    %146 = vmatmul.mubr.bf16.gmra.mxu0 %v111
    %v147 = vpop.f32.mrf.mxu0
    %v148 = vadd.f32 %v96, %v147
    %v149 = vpop.f32.mrf.mxu0
    %v150 = vpop.f32.mrf.mxu0
    %v151 = vadd.f32 %v96, %v150
    %v152 = vpop.f32.mrf.mxu0
    %153 = vdwg.mxu0
    %v154 = vld [vmem:[#allocation2] sm:$0x1]
    %s155 = vtos %v154
    %vm156 = vcmp.ge.f32.partialorder %v148, 0.0
    %vm157 = vcmp.ge.f32.partialorder %v151, 0.0
    %v158 = vstv %s155
    %v159 = vmul.f32 %v158, %v148
    %v160 = vmul.f32 %v158, %v151
    %v161 = vsel %vm156, %v148, %v159
    %v162 = vsel %vm157, %v151, %v160
    %v163 = vld [vmem:[#allocation9] sm:$0xff]
    %v164 = vld [vmem:[#allocation9 + $0x8] sm:$0xff]
    %v165 = vld [vmem:[#allocation9 + $0x10] sm:$0xff]
    %v166 = vld [vmem:[#allocation9 + $0x18] sm:$0xff]
    %v167 = vld [vmem:[#allocation9 + $0x20] sm:$0xff]
    %v168 = vld [vmem:[#allocation9 + $0x28] sm:$0xff]
    %v169 = vld [vmem:[#allocation9 + $0x30] sm:$0xff]
    %v170 = vld [vmem:[#allocation9 + $0x38] sm:$0xff]
    %v171 = vld [vmem:[#allocation9 + $0x40] sm:$0xff]
    %v172 = vld [vmem:[#allocation9 + $0x48] sm:$0xff]
    %v173 = vld [vmem:[#allocation9 + $0x50] sm:$0xff]
    %v174 = vld [vmem:[#allocation9 + $0x58] sm:$0xff]
    %v175 = vld [vmem:[#allocation9 + $0x60] sm:$0xff]
    %v176 = vld [vmem:[#allocation9 + $0x68] sm:$0xff]
    %v177 = vld [vmem:[#allocation9 + $0x70] sm:$0xff]
    %v178 = vld [vmem:[#allocation9 + $0x78] sm:$0xff]
    %v179 = vld [vmem:[#allocation8] sm:$0xff]
    %v180 = vld [vmem:[#allocation8 + $0x8] sm:$0xff]
    %181 = vmatprep.subr.mxu0 0.0
    %182 = vmatpush1.msra.mxu0 %v178
    %183 = vmatprep.subr.mxu0 0.0
    %184 = vmatpush1.msra.mxu0 %v177
    %185 = vmatprep.subr.mxu0 0.0
    %186 = vmatpush1.msra.mxu0 %v176
    %187 = vmatprep.subr.mxu0 0.0
    %188 = vmatpush1.msra.mxu0 %v175
    %189 = vmatprep.subr.mxu0 0.0
    %190 = vmatpush1.msra.mxu0 %v174
    %191 = vmatprep.subr.mxu0 0.0
    %192 = vmatpush1.msra.mxu0 %v173
    %193 = vmatprep.subr.mxu0 0.0
    %194 = vmatpush1.msra.mxu0 %v172
    %195 = vmatprep.subr.mxu0 0.0
    %196 = vmatpush1.msra.mxu0 %v171
    %197 = vmatprep.subr.mxu0 0.0
    %198 = vmatpush1.msra.mxu0 %v170
    %199 = vmatprep.subr.mxu0 0.0
    %200 = vmatpush1.msra.mxu0 %v169
    %201 = vmatprep.subr.mxu0 0.0
    %202 = vmatpush1.msra.mxu0 %v168
    %203 = vmatprep.subr.mxu0 0.0
    %204 = vmatpush1.msra.mxu0 %v167
    %205 = vmatprep.subr.mxu0 0.0
    %206 = vmatpush1.msra.mxu0 %v166
    %207 = vmatprep.subr.mxu0 0.0
    %208 = vmatpush1.msra.mxu0 %v165
    %209 = vmatprep.subr.mxu0 0.0
    %210 = vmatpush1.msra.mxu0 %v164
    %211 = vmatprep.subr.mxu0 0.0
    %212 = vmatpush1.msra.mxu0 %v163
    %213 = vmatprep.subr.mxu0 0.0
    %214 = vmatpush2.msra.mxu0 0.0
    %215 = vmatprep.subr.mxu0 0.0
    %216 = vmatpush2.msra.mxu0 0.0
    %217 = vmatprep.subr.mxu0 0.0
    %218 = vmatpush2.msra.mxu0 0.0
    %219 = vmatprep.subr.mxu0 0.0
    %220 = vmatpush2.msra.mxu0 0.0
    %221 = vmatprep.subr.mxu0 0.0
    %222 = vmatpush2.msra.mxu0 0.0
    %223 = vmatprep.subr.mxu0 0.0
    %224 = vmatpush2.msra.mxu0 0.0
    %225 = vmatprep.subr.mxu0 0.0
    %226 = vmatpush2.msra.mxu0 0.0
    %227 = vmatprep.subr.mxu0 0.0
    %228 = vmatpush2.msra.mxu0 0.0
    %229 = vmatprep.subr.mxu0 0.0
    %230 = vmatpush2.msra.mxu0 0.0
    %231 = vmatprep.subr.mxu0 0.0
    %232 = vmatpush2.msra.mxu0 0.0
    %233 = vmatprep.subr.mxu0 0.0
    %234 = vmatpush2.msra.mxu0 0.0
    %235 = vmatprep.subr.mxu0 0.0
    %236 = vmatpush2.msra.mxu0 0.0
    %237 = vmatprep.subr.mxu0 0.0
    %238 = vmatpush2.msra.mxu0 0.0
    %239 = vmatprep.subr.mxu0 0.0
    %240 = vmatpush2.msra.mxu0 0.0
    %241 = vmatprep.subr.mxu0 0.0
    %242 = vmatpush2.msra.mxu0 0.0
    %243 = vmatprep.subr.mxu0 0.0
    %244 = vmatpush2.msra.mxu0 0.0
    %245 = vmatprep.mubr.f32.mxu0 0.0
    %246 = vmatmul.mubr.f32.gmra.mxu0 %v161
    %v247 = vpop.f32.mrf.mxu0
    %v248 = vadd.f32 %v179, %v247
    %v249 = vpop.f32.mrf.mxu0
    %250 = vmatprep.mubr.f32.mxu0 0.0
    %251 = vmatmul.mubr.f32.gmra.mxu0 %v162
    %v252 = vpop.f32.mrf.mxu0
    %v253 = vadd.f32 %v180, %v252
    %v254 = vpop.f32.mrf.mxu0
    %255 = vdwg.mxu0
    %v256 = vpack.c.bf16 %v253, %v248
    %v258 = vunpack.c.l.b16 %v256
    %v259 = vunpack.c.h.b16 %v256
    %v260 = vpack.c.b16 %v258, %v258
    %v261 = vpack.c.b16 %v259, %v259
    %264 = vst [vmem:[#allocation11] sm:$0xf] %v260
    %265 = vst [vmem:[#allocation11 + $0x4] sm:$0xf] %v261
    // Predicated region
    $region42: #{tpu_custom_call.1} parent=1 // pred_check
      _
    $region43: #{tpu_custom_call.1} parent=1 // pred_check_branch
      %267 = sbr.rel (0) target = $region45
    $region44: #{tpu_custom_call.1} parent=1 // pred_region
      %s269 = ssub.s32 128, 128
      %270 = vsyncadd [#allocation5], %s269
      %s271 = sshll.u32 [#allocation11], 4
      %s272 = int_to_ptr.vmem [resolvable:$true] %s271
      %277 = dma.vmem_to_hbm [thread:$0]  %s272, 128, %s6, [#allocation5], 64, 64, 4
    $region45: #{tpu_custom_call.1} parent=1 // pred_fallthru
      _
    // Predicated region
    $region46: #{tpu_custom_call.1} parent=1 // pred_check
      _
    $region47: #{tpu_custom_call.1} parent=1 // pred_check_branch
      %279 = sbr.rel (0) target = $region49
    $region48: #{tpu_custom_call.1} parent=1 // pred_region
      %280 = dma.done [#allocation5], 128
    $region49: #{tpu_custom_call.1} parent=1 // pred_fallthru
      _
    %281 = vsyncpa [#allocation4], 1
    %282 = vsyncpa [#allocation7], 1
    %283 = vsyncpa [#allocation10], 1
    %284 = vsyncpa [#allocation5], 1

</llo_original>
